<compile_context>
chip_gen: v6e
topology: v6e:2x2x1
jax: 0.10.0
libtpu: 0.0.40
codegen_flags: <defaults>
</compile_context>

<pallas_src>
import functools

import jax
import jax.numpy as jnp
from jax.experimental import pallas as pl
from jax.experimental.pallas import tpu as pltpu


# ----------------------------- hardware queries -----------------------------

def _vmem_capacity_bytes():
    """Physical VMEM per TensorCore (falls back to 128 MiB if unknown)."""
    try:
        info = pltpu.get_tpu_info()
        cap = getattr(info, "vmem_capacity_bytes", None)
        if cap:
            return int(cap)
    except Exception:
        pass
    return 128 * 1024 * 1024


def _num_tensorcores():
    """Heuristic TensorCore count per chip (v7x has 2; v5e/v6e have 1)."""
    # TODO(synk): replace the device_kind string match with a proper core-count
    # query once pltpu.get_tpu_info() exposes it.
    try:
        kind = (getattr(jax.devices()[0], "device_kind", "") or "").lower()
        if "v7" in kind or "7x" in kind:
            return 2
    except Exception:
        pass
    return 1


# --------------------------------- kernel -----------------------------------

def _avg_pool_kernel(x_ref, o_ref, acc_ref, *, hw_total, hw_chunk, needs_mask):
    # x_ref:  (1, 1, C_split, hw_chunk)   input tile (lane axis = spatial)
    # o_ref:  (1, 1, C_split) f32         per-(batch, split) pooled mean
    # acc_ref:(1, 1, C_split) f32         pooled-sum accumulator (scratch)
    hw = pl.program_id(2)
    last = pl.num_programs(2) - 1

    @pl.when(hw == 0)
    def _init():
        acc_ref[...] = jnp.zeros_like(acc_ref)

    x = x_ref[...].astype(jnp.float32)                # (1, 1, C_split, hw_chunk)

    if needs_mask:
        # Mask only on the final (ragged) chunk; all earlier chunks are a
        # plain lane reduction with no iota/compare/select filler.
        @pl.when(hw < last)
        def _accumulate():
            acc_ref[...] += jnp.sum(x, axis=3)

        @pl.when(hw == last)
        def _accumulate_masked():
            lane = jax.lax.broadcasted_iota(jnp.int32, x.shape, dimension=3)
            valid = (hw * hw_chunk + lane) < hw_total
            acc_ref[...] += jnp.sum(jnp.where(valid, x, 0.0), axis=3)
    else:
        acc_ref[...] += jnp.sum(x, axis=3)

    @pl.when(hw == last)
    def _finalize():
        o_ref[...] = acc_ref[...] * jnp.float32(1.0 / hw_total)


# --------------------------------- wrapper ----------------------------------

@functools.partial(jax.jit, static_argnames=("hw_chunk_bytes", "num_splits"))
def channel_attention(x, w1, b1, w2, b2, *, hw_chunk_bytes=None, num_splits=None):
    """x: (B, C, H, W); w1: (hidden, C); b1: (hidden,); w2: (C, hidden); b2: (C,)."""
    B, C, H, W = x.shape
    HW = H * W
    itemsize = jnp.dtype(x.dtype).itemsize

    # -- generation-aware tile / VMEM budget -------------------------------
    vmem_total = _vmem_capacity_bytes()
    if hw_chunk_bytes is None:
        # ~32 MiB per x buffer on 128 MiB-VMEM chips (v5e/v6e),
        # ~16 MiB per x buffer on 64 MiB-VMEM chips (v7x).
        hw_chunk_bytes = int(min(32 * 1024 * 1024,
                                 max(4 * 1024 * 1024, vmem_total // 4)))
    # Double-buffered input tiles + small headroom, capped below physical VMEM.
    vmem_limit = min(int(vmem_total * 0.8),
                     2 * hw_chunk_bytes + 8 * 1024 * 1024)
    vmem_limit = max(vmem_limit, 16 * 1024 * 1024)

    # -- dual-TensorCore split for small batch (v7x) ------------------------
    if num_splits is None:
        num_splits = 2 if (_num_tensorcores() >= 2 and B < 2 and C % 2 == 0) else 1
    if C % num_splits != 0:
        num_splits = 1
    c_split = C // num_splits

    # -- spatial chunking ----------------------------------------------------
    LANE = 128
    max_hw = max(LANE, (hw_chunk_bytes // (c_split * itemsize)) // LANE * LANE)
    hw_chunk = HW if HW <= max_hw else max_hw
    num_hw = -(-HW // hw_chunk)                       # cdiv
    needs_mask = (num_hw * hw_chunk != HW)

    # Metadata-only reshape: NCHW is contiguous, channel splits are contiguous.
    x4 = x.reshape(B, num_splits, c_split, HW)

    kernel = functools.partial(
        _avg_pool_kernel, hw_total=HW, hw_chunk=hw_chunk, needs_mask=needs_mask)

    cost = pl.CostEstimate(
        flops=B * C * HW,                              # the pooling adds
        transcendentals=0,
        bytes_accessed=B * C * HW * itemsize + B * C * 4)

    pooled = pl.pallas_call(
        kernel,
        out_shape=jax.ShapeDtypeStruct((B, num_splits, c_split), jnp.float32),
        grid=(B, num_splits, num_hw),
        in_specs=[
            pl.BlockSpec((1, 1, c_split, hw_chunk),
                         lambda b, s, hw: (b, s, 0, hw)),
        ],
        out_specs=pl.BlockSpec((1, 1, c_split), lambda b, s, hw: (b, s, 0)),
        scratch_shapes=[pltpu.VMEM((1, 1, c_split), jnp.float32)],
        compiler_params=pltpu.CompilerParams(
            dimension_semantics=("parallel", "parallel", "arbitrary"),
            vmem_limit_bytes=vmem_limit),
        cost_estimate=cost,
    )(x4)

    # -- tiny FC epilogue in plain XLA, batched over B -----------------------
    y = pooled.reshape(B, C)                           # f32 pooled means
    w1f = w1.astype(jnp.float32)
    b1f = b1.astype(jnp.float32)
    w2f = w2.astype(jnp.float32)
    b2f = b2.astype(jnp.float32)
    # Contract against the weights' native (out_features, in_features) layout.
    h = jax.lax.dot_general(y, w1f, (((1,), (1,)), ((), ())),
                            preferred_element_type=jnp.float32) + b1f
    h = jnp.maximum(h, 0.0)
    z = jax.lax.dot_general(h, w2f, (((1,), (1,)), ((), ())),
                            preferred_element_type=jnp.float32) + b2f
    z = jax.nn.sigmoid(z)

    # Matches PyTorch's y.view(batch_size, num_channels, 1, 1)
    return z.astype(x.dtype).reshape(B, C, 1, 1)


# ------------------------------ reference / init ----------------------------

def init_params(key, in_channels, reduction_ratio=16, dtype=jnp.float32):
    """Deterministic init mirroring nn.Linear default (uniform +-1/sqrt(fan_in))."""
    hidden = in_channels // reduction_ratio
    k1, k2, k3, k4 = jax.random.split(key, 4)
    bound1 = 1.0 / (in_channels ** 0.5)
    bound2 = 1.0 / (hidden ** 0.5)
    w1 = jax.random.uniform(k1, (hidden, in_channels), dtype, -bound1, bound1)
    b1 = jax.random.uniform(k2, (hidden,), dtype, -bound1, bound1)
    w2 = jax.random.uniform(k3, (in_channels, hidden), dtype, -bound2, bound2)
    b2 = jax.random.uniform(k4, (in_channels,), dtype, -bound2, bound2)
    return w1, b1, w2, b2


def reference_jax(x, w1, b1, w2, b2):
    """Pure-JAX reference for correctness check."""
    B, C, _, _ = x.shape
    y = jnp.mean(x.astype(jnp.float32), axis=(2, 3))
    h = jnp.maximum(y @ w1.astype(jnp.float32).T + b1.astype(jnp.float32), 0.0)
    z = jax.nn.sigmoid(h @ w2.astype(jnp.float32).T + b2.astype(jnp.float32))
    return z.astype(x.dtype).reshape(B, C, 1, 1)


# ----------------------------------- main ------------------------------------

if __name__ == "__main__":
    key = jax.random.PRNGKey(0)
    kx1, kx2, kx3, kp = jax.random.split(key, 4)

    # reduction_ratio=16 needs C >= 16.
    C = 32
    w1, b1, w2, b2 = init_params(kp, C, reduction_ratio=16)

    def check(out, ref, atol, rtol, tag):
        assert out.shape == ref.shape, (tag, out.shape, ref.shape)
        ok = jnp.allclose(out.astype(jnp.float32), ref.astype(jnp.float32),
                          atol=atol, rtol=rtol)
        assert ok, (tag, float(jnp.max(jnp.abs(out.astype(jnp.float32)
                                               - ref.astype(jnp.float32)))))

    # Case 1: single chunk, H*W a multiple of 128 (no mask, no padding).
    x = jax.random.normal(kx1, (2, C, 16, 16), dtype=jnp.float32)
    out = jax.block_until_ready(channel_attention(x, w1, b1, w2, b2))
    check(out, reference_jax(x, w1, b1, w2, b2), 1e-5, 1e-5, "case1")

    # Case 2: single chunk, H*W NOT a multiple of 128 (relies on Mosaic's
    # implicit lane padding in the reduce — the reviewer-requested case).
    x2 = jax.random.normal(kx2, (2, C, 17, 17), dtype=jnp.float32)
    out2 = jax.block_until_ready(channel_attention(x2, w1, b1, w2, b2))
    check(out2, reference_jax(x2, w1, b1, w2, b2), 1e-5, 1e-5, "case2")

    # Case 3: multi-chunk + ragged last chunk (accumulate + last-step mask),
    # forced by a tiny per-chunk byte budget.
    out3 = jax.block_until_ready(
        channel_attention(x2, w1, b1, w2, b2, hw_chunk_bytes=16 * 1024))
    check(out3, reference_jax(x2, w1, b1, w2, b2), 1e-5, 1e-5, "case3")

    # Case 4: forced channel split (dual-TensorCore path) at batch 1 with a
    # ragged spatial axis — exercises init / masked add / finalize composing.
    x4 = jax.random.normal(kx3, (1, C, 17, 17), dtype=jnp.float32)
    out4 = jax.block_until_ready(
        channel_attention(x4, w1, b1, w2, b2, hw_chunk_bytes=16 * 1024,
                          num_splits=2))
    check(out4, reference_jax(x4, w1, b1, w2, b2), 1e-5, 1e-5, "case4")

    # Case 5: bf16 input (f32 accumulation inside the kernel).
    x5 = jax.random.normal(kx1, (2, C, 16, 16), dtype=jnp.float32).astype(
        jnp.bfloat16)
    out5 = jax.block_until_ready(channel_attention(x5, w1, b1, w2, b2))
    check(out5, reference_jax(x5, w1, b1, w2, b2), 1e-2, 1e-2, "case5")

    print("KERNEL_OK")
</pallas_src>

<mosaic_0001>
module attributes {stable_mosaic.version = 11 : i64} {
  func.func @_avg_pool_kernel(%arg0: i32, %arg1: i32, %arg2: i32, %arg3: memref<1x1x32x256xf32, #tpu.memory_space<vmem>>, %arg4: memref<1x1x32xf32, #tpu.memory_space<vmem>>, %arg5: memref<1x1x32xf32, #tpu.memory_space<vmem>>) attributes {dimension_semantics = [#tpu.dimension_semantics<parallel>, #tpu.dimension_semantics<parallel>, #tpu.dimension_semantics<arbitrary>], iteration_bounds = array<i64: 2, 1, 1>, scalar_prefetch = 0 : i64, scratch_operands = 1 : i64, tpu.core_type = #tpu.core_type<tc>, window_params = [{transform_indices = @transform_0, window_bounds = array<i64: 1, 1, 32, 256>}, {transform_indices = @transform_1, window_bounds = array<i64: 1, 1, 32>}]} {
    %c0_i32 = arith.constant 0 : i32
    %0 = arith.cmpi eq, %arg2, %c0_i32 : i32
    %1 = arith.extui %0 : i1 to i32
    %c0_i32_0 = arith.constant 0 : i32
    %2 = arith.cmpi ne, %1, %c0_i32_0 : i32
    scf.if %2 {
      %cst_12 = arith.constant 0.000000e+00 : f32
      %11 = vector.broadcast %cst_12 : f32 to vector<1x1x32xf32>
      %c0_13 = arith.constant 0 : index
      %c0_14 = arith.constant 0 : index
      %c0_15 = arith.constant 0 : index
      %12 = vector.load %arg5[%c0_13, %c0_14, %c0_15] : memref<1x1x32xf32, #tpu.memory_space<vmem>>, vector<1x1x32xf32>
      tpu.vector_store %arg5[%c0_13, %c0_14, %c0_15], %11 {strides = array<i32>} : memref<1x1x32xf32, #tpu.memory_space<vmem>>, vector<1x1x32xf32>,
    } else {
    }
    %c0 = arith.constant 0 : index
    %c0_1 = arith.constant 0 : index
    %c0_2 = arith.constant 0 : index
    %c0_3 = arith.constant 0 : index
    %3 = vector.load %arg3[%c0, %c0_1, %c0_2, %c0_3] : memref<1x1x32x256xf32, #tpu.memory_space<vmem>>, vector<1x1x32x256xf32>
    %c0_4 = arith.constant 0 : index
    %c0_5 = arith.constant 0 : index
    %c0_6 = arith.constant 0 : index
    %4 = vector.load %arg5[%c0_4, %c0_5, %c0_6] : memref<1x1x32xf32, #tpu.memory_space<vmem>>, vector<1x1x32xf32>
    %cst = arith.constant dense<0.000000e+00> : vector<1x1x32xf32>
    %5 = vector.multi_reduction <add>, %3, %cst [3] : vector<1x1x32x256xf32> to vector<1x1x32xf32>
    %6 = arith.addf %4, %5 : vector<1x1x32xf32>
    %c0_7 = arith.constant 0 : index
    %c0_8 = arith.constant 0 : index
    %c0_9 = arith.constant 0 : index
    %7 = vector.load %arg5[%c0_7, %c0_8, %c0_9] : memref<1x1x32xf32, #tpu.memory_space<vmem>>, vector<1x1x32xf32>
    tpu.vector_store %arg5[%c0_7, %c0_8, %c0_9], %6 {strides = array<i32>} : memref<1x1x32xf32, #tpu.memory_space<vmem>>, vector<1x1x32xf32>,
    %c0_i32_10 = arith.constant 0 : i32
    %8 = arith.cmpi eq, %arg2, %c0_i32_10 : i32
    %9 = arith.extui %8 : i1 to i32
    %c0_i32_11 = arith.constant 0 : i32
    %10 = arith.cmpi ne, %9, %c0_i32_11 : i32
    scf.if %10 {
      %c0_12 = arith.constant 0 : index
      %c0_13 = arith.constant 0 : index
      %c0_14 = arith.constant 0 : index
      %11 = vector.load %arg5[%c0_12, %c0_13, %c0_14] : memref<1x1x32xf32, #tpu.memory_space<vmem>>, vector<1x1x32xf32>
      %cst_15 = arith.constant 3.906250e-03 : f32
      %12 = vector.broadcast %cst_15 : f32 to vector<1x1x32xf32>
      %13 = arith.mulf %11, %12 : vector<1x1x32xf32>
      %c0_16 = arith.constant 0 : index
      %c0_17 = arith.constant 0 : index
      %c0_18 = arith.constant 0 : index
      %14 = vector.load %arg4[%c0_16, %c0_17, %c0_18] : memref<1x1x32xf32, #tpu.memory_space<vmem>>, vector<1x1x32xf32>
      tpu.vector_store %arg4[%c0_16, %c0_17, %c0_18], %13 {strides = array<i32>} : memref<1x1x32xf32, #tpu.memory_space<vmem>>, vector<1x1x32xf32>,
    } else {
    }
    return
  }
  func.func @transform_0(%arg0: i32, %arg1: i32, %arg2: i32) -> (i32, i32, i32, i32) {
    %c0_i32 = arith.constant 0 : i32
    %c0_i32_0 = arith.constant 0 : i32
    return %arg0, %arg1, %c0_i32, %arg2 : i32, i32, i32, i32
  }
  func.func @transform_1(%arg0: i32, %arg1: i32, %arg2: i32) -> (i32, i32, i32) {
    %c0_i32 = arith.constant 0 : i32
    %c0_i32_0 = arith.constant 0 : i32
    return %arg0, %arg1, %c0_i32 : i32, i32, i32
  }
}

</mosaic_0001>

<llo_original>
// kernel: channel_attention.1
$region0: #{channel_attention.1}
  #allocation0 [shape = 'u32[]', space=smem, size = 0x4, offset = 0x4, fixed_abs, tag = 'smem constant byte address 0x4 - core index']
  #allocation1 [shape = 'u32[144,128]{1,0:T(1,128)}', space=vmem, size = 0x12000, scoped, tag = 'internal scratch']
  #allocation2 [shape = 'f32[1,1,32]{2,1,0:T(1,128)}', space=vmem, size = 0x200, scoped, tag = 'scratch operand']
  %s0 = inlined_call_operand.vmem [shape: f32[2,1,32,256], index: 0, kind: input, shape index: {}]
  %s1 = inlined_call_operand.vmem [shape: f32[2,1,32], index: 1, kind: output, shape index: {}]
  %s2 = sld [smem:[#allocation0]]
  $region45: #{channel_attention.1} parent=0
    _
  %s4 = ssub.s32 1, %s2
  %s5 = scalar_select 0, %s4, %s2
  loop: start=0, step=1, limit=4
  $region2: #{channel_attention.1} parent=0 // loop_pre_header
    _
  $region3: #{channel_attention.1} parent=0 // loop_header
    %s7 = sphi 0, %s11
    %p8 = scmp.ge.s32.totalorder %s7, 4
    %s14 = sphi 0, %s33
    %s15 = sphi 0, %s29
    %s16 = sphi 0, %s25
    %s17 = sphi 0, %s14
    %s18 = sphi 0, %s15
    %s19 = sphi 0, %s16
    %s20 = sphi 0, %s17
    %s21 = sphi 0, %s18
    %s22 = sphi 0, %s19
    %s40 = sphi 0, %s42
    %s43 = sphi 0, %s40
    %s44 = sphi 0, %s43
    %s60 = sphi 0, %s44
    %s68 = sphi 0, %s70
    %s71 = sphi 0, %s68
    %s72 = sphi 0, %s71
    %s88 = sphi 0, %s72
  $region4: #{channel_attention.1} parent=0 // loop_header_branch
    %10 = sbr.rel (%p8) target = $region8
  $region5: #{channel_attention.1} parent=0 // loop_body
    %s12 = ssub.s32 %s7, 1
    %s13 = ssub.s32 %s7, 2
    %s23 = sadd.s32 1, %s16
    %p24 = scmp.ge.s32.totalorder %s23, 1
    %s25 = scalar_select %p24, 0, %s23
    %s26 = sadd.s32 1, %s15
    %s27 = scalar_select %p24, %s26, %s15
    %p28 = scmp.ge.s32.totalorder %s27, 1
    %s29 = scalar_select %p28, 0, %s27
    %s30 = sadd.s32 1, %s14
    %s31 = scalar_select %p28, %s30, %s14
    %p32 = scmp.ge.s32.totalorder %s31, 2
    %s33 = scalar_select %p32, 0, %s31
    %s34 = ssub.s32 %s14, %s33
    %s35 = ssub.s32 %s15, %s29
    %s36 = sor.u32 %s34, %s35
    %s37 = ssub.s32 %s16, %s25
    %s38 = sor.u32 %s36, %s37
    %p39 = scmp.eq.s32.totalorder %s38, 0
    %s41 = sadd.s32 %s40, 1
    %s42 = scalar_select %p39, %s40, %s41
    %p45 = pneg %p39
    %p46 = scmp.eq.s32.totalorder %s7, 1
    %p47 = por %p45, %p46
    %p48 = scmp.ne.s32.totalorder %s40, %s43
    %p49 = scmp.eq.s32.totalorder %s7, 0
    %p50 = por %p48, %p49
    %p51 = scmp.ne.s32.totalorder %s40, %s43
    %p52 = scmp.eq.s32.totalorder %s12, 1
    %p53 = por %p51, %p52
    %p54 = scmp.ne.s32.totalorder %s43, %s44
    %p55 = scmp.eq.s32.totalorder %s12, 0
    %p56 = por %p54, %p55
    %p57 = scmp.ne.s32.totalorder %s43, %s44
    %p58 = scmp.eq.s32.totalorder %s13, 1
    %p59 = por %p57, %p58
    %p61 = scmp.ne.s32.totalorder %s44, %s60
    %p62 = scmp.eq.s32.totalorder %s13, 0
    %p63 = por %p61, %p62
    %s64 = ssub.s32 %s14, %s33
    %s65 = ssub.s32 %s15, %s29
    %s66 = sor.u32 %s64, %s65
    %p67 = scmp.eq.s32.totalorder %s66, 0
    %s69 = sadd.s32 %s68, 1
    %s70 = scalar_select %p67, %s68, %s69
    %p73 = pneg %p67
    %p74 = scmp.eq.s32.totalorder %s7, 1
    %p75 = por %p73, %p74
    %p76 = scmp.ne.s32.totalorder %s68, %s71
    %p77 = scmp.eq.s32.totalorder %s7, 0
    %p78 = por %p76, %p77
    %p79 = scmp.ne.s32.totalorder %s68, %s71
    %p80 = scmp.eq.s32.totalorder %s12, 1
    %p81 = por %p79, %p80
    %p82 = scmp.ne.s32.totalorder %s71, %s72
    %p83 = scmp.eq.s32.totalorder %s12, 0
    %p84 = por %p82, %p83
    %p85 = scmp.ne.s32.totalorder %s71, %s72
    %p86 = scmp.eq.s32.totalorder %s13, 1
    %p87 = por %p85, %p86
    %p89 = scmp.ne.s32.totalorder %s72, %s88
    %p90 = scmp.eq.s32.totalorder %s13, 0
    %p91 = por %p89, %p90
    %p92 = scmp.le.s32.totalorder 1, %s7
    %p93 = scmp.lt.s32.totalorder %s7, 3
    %p94 = pnand %p92, %p93
    %p95 = pneg %p94
    // Predicated region
    $region9: #{channel_attention.1} parent=5 // pred_check
      _
    $region10: #{channel_attention.1} parent=5 // pred_check_branch
      %97 = sbr.rel (%p94) target = $region12
    $region11: #{channel_attention.1} parent=5 // pred_region
      %s98 = ssub.s32 %s7, 1
    $region12: #{channel_attention.1} parent=5 // pred_fallthru
      _
    %p99 = scmp.lt.s32.totalorder %s7, 2
    // Predicated region
    $region13: #{channel_attention.1} parent=5 // pred_check
      %p100 = pneg %p99
    $region14: #{channel_attention.1} parent=5 // pred_check_branch
      %102 = sbr.rel (%p100) target = $region16
    $region15: #{channel_attention.1} parent=5 // pred_region
      // Predicated region
      $region17: #{channel_attention.1} parent=15 // pred_check
        %p103 = pneg %p50
      $region18: #{channel_attention.1} parent=15 // pred_check_branch
        %105 = sbr.rel (%p103) target = $region20
      $region19: #{channel_attention.1} parent=15 // pred_region
        %s106 = smul.u32 2, %s16
        %p107 = scmp.lt.s32.totalorder %s14, 1
        %s108 = scalar_select %p107, %s14, 1
        %p109 = scmp.lt.s32.totalorder %s15, 0
        %s110 = scalar_select %p109, %s15, 0
        %p111 = scmp.lt.s32.totalorder %s106, 1
        %s112 = scalar_select %p111, %s106, 1
        %s113 = smul.addr %s110, 8
        %s114 = sadd.s32 %s112, %s113
        %s115 = smul.addr %s108, 8
        %s116 = sadd.s32 %s114, %s115
        %s117 = smul.addr %s116, 8
        %s118 = scalar_lea.vmem %s0, %s117
        %s119 = smul.u32 2, %s16
      $region20: #{channel_attention.1} parent=15 // pred_fallthru
        _
    $region16: #{channel_attention.1} parent=5 // pred_fallthru
      _
    %p120 = scmp.le.s32.totalorder 1, %s7
    %p121 = scmp.lt.s32.totalorder %s7, 3
    %p122 = pnand %p120, %p121
    %p123 = pneg %p122
    // Predicated region
    $region21: #{channel_attention.1} parent=5 // pred_check
      _
    $region22: #{channel_attention.1} parent=5 // pred_check_branch
      %125 = sbr.rel (%p122) target = $region24
    $region23: #{channel_attention.1} parent=5 // pred_region
      %s126 = ssub.s32 %s7, 1
      %s127 = smul.u32 2, %s19
      %p128 = scmp.lt.s32.totalorder %s17, 1
      %s129 = scalar_select %p128, %s17, 1
      %p130 = scmp.lt.s32.totalorder %s18, 0
      %s131 = scalar_select %p130, %s18, 0
      %p132 = scmp.lt.s32.totalorder %s127, 1
      %s133 = scalar_select %p132, %s127, 1
      %s134 = smul.addr %s131, 8
      %s135 = sadd.s32 %s133, %s134
      %s136 = smul.addr %s129, 8
      %s137 = sadd.s32 %s135, %s136
      %s138 = smul.addr %s137, 8
      %s139 = scalar_lea.vmem %s0, %s138
      %p140 = pneg %p56
      %p141 = pneg %p53
      %p142 = pneg %p84
      %p143 = pneg %p81
      %p144 = scmp.lt.s32.totalorder %s17, 1
      %s145 = scalar_select %p144, %s17, 1
      %p146 = scmp.lt.s32.totalorder %s18, 0
      %s147 = scalar_select %p146, %s18, 0
      %s148 = sadd.s32 %s147, %s145
      %s149 = scalar_lea.vmem %s1, %s148
      %s150 = smul.u32 2, %s19
      %p151 = scmp.lt.s32.totalorder %s17, 1
      %s152 = scalar_select %p151, %s17, 1
      %p153 = scmp.lt.s32.totalorder %s18, 0
      %s154 = scalar_select %p153, %s18, 0
      %p155 = scmp.lt.s32.totalorder %s150, 1
      %s156 = scalar_select %p155, %s150, 1
      %s157 = smul.addr %s154, 8
      %s158 = sadd.s32 %s156, %s157
      %s159 = smul.addr %s152, 8
      %s160 = sadd.s32 %s158, %s159
      %s161 = smul.addr %s160, 8
      %s162 = scalar_lea.vmem %s0, %s161
      %s163 = smul.u32 2, %s19
      %p164 = scmp.lt.s32.totalorder %s17, 1
      %s165 = scalar_select %p164, %s17, 1
      %p166 = scmp.lt.s32.totalorder %s18, 0
      %s167 = scalar_select %p166, %s18, 0
      %s168 = sadd.s32 %s167, %s165
      %s169 = scalar_lea.vmem %s1, %s168
      %p170 = scmp.eq.s32.totalorder %s19, 0
      // Predicated region
      $region25: #{channel_attention.1} parent=23 // pred_check
        %p171 = pneg %p170
      $region26: #{channel_attention.1} parent=23 // pred_check_branch
        %173 = sbr.rel (%p171) target = $region28
      $region27: #{channel_attention.1} parent=23 // pred_region
        %vm174 = vcmask 253952
        %175 = vst.msk [vmem:[#allocation2] sm:$0x1] %vm174, 0.0
      $region28: #{channel_attention.1} parent=23 // pred_fallthru
        _
      %v176 = vld [vmem:[%s162] sm:$0xff]
      %v177 = vld [vmem:[%s162 + $0x8] sm:$0xff]
      %v178 = vld [vmem:[%s162 + $0x10] sm:$0xff]
      %v179 = vld [vmem:[%s162 + $0x18] sm:$0xff]
      %v180 = vld [vmem:[%s162 + $0x20] sm:$0xff]
      %v181 = vld [vmem:[%s162 + $0x28] sm:$0xff]
      %v182 = vld [vmem:[%s162 + $0x30] sm:$0xff]
      %v183 = vld [vmem:[%s162 + $0x38] sm:$0xff]
      %v184 = vld [vmem:[#allocation2] sm:$0x1]
      %v185 = vadd.f32 %v176, %v177
      %186 = vadd.xlane.f32.xlu0 %v185
      %v187 = vpop.xlane.xlu0 %186
      %v188 = vadd.f32 %v178, %v179
      %189 = vadd.xlane.f32.xlu0 %v188
      %v190 = vpop.xlane.xlu0 %189
      %v191 = vadd.f32 %v180, %v181
      %192 = vadd.xlane.f32.xlu0 %v191
      %v193 = vpop.xlane.xlu0 %192
      %v194 = vadd.f32 %v182, %v183
      %195 = vadd.xlane.f32.xlu0 %v194
      %v196 = vpop.xlane.xlu0 %195
      %v201 = vlaneseq
      %v202 = vshrl.u32 %v201, 7
      %v203 = vsub.s32 0, %v202
      %v204 = vrot.slane %v187, %v203
      %v205 = vlaneseq
      %v206 = vshrl.u32 %v205, 7
      %v207 = vsub.s32 1, %v206
      %v208 = vrot.slane %v187, %v207
      %v209 = vlaneseq
      %v210 = vshrl.u32 %v209, 7
      %v211 = vsub.s32 2, %v210
      %v212 = vrot.slane %v187, %v211
      %v213 = vlaneseq
      %v214 = vshrl.u32 %v213, 7
      %v215 = vsub.s32 3, %v214
      %v216 = vrot.slane %v187, %v215
      %v217 = vlaneseq
      %v218 = vshrl.u32 %v217, 7
      %v219 = vsub.s32 4, %v218
      %v220 = vrot.slane %v187, %v219
      %v221 = vlaneseq
      %v222 = vshrl.u32 %v221, 7
      %v223 = vsub.s32 5, %v222
      %v224 = vrot.slane %v187, %v223
      %v225 = vlaneseq
      %v226 = vshrl.u32 %v225, 7
      %v227 = vsub.s32 6, %v226
      %v228 = vrot.slane %v187, %v227
      %v229 = vlaneseq
      %v230 = vshrl.u32 %v229, 7
      %v231 = vsub.s32 7, %v230
      %v232 = vrot.slane %v187, %v231
      %v233 = vlaneseq
      %v234 = vshrl.u32 %v233, 7
      %v235 = vsub.s32 0, %v234
      %v236 = vrot.slane %v190, %v235
      %v237 = vlaneseq
      %v238 = vshrl.u32 %v237, 7
      %v239 = vsub.s32 1, %v238
      %v240 = vrot.slane %v190, %v239
      %v241 = vlaneseq
      %v242 = vshrl.u32 %v241, 7
      %v243 = vsub.s32 2, %v242
      %v244 = vrot.slane %v190, %v243
      %v245 = vlaneseq
      %v246 = vshrl.u32 %v245, 7
      %v247 = vsub.s32 3, %v246
      %v248 = vrot.slane %v190, %v247
      %v249 = vlaneseq
      %v250 = vshrl.u32 %v249, 7
      %v251 = vsub.s32 4, %v250
      %v252 = vrot.slane %v190, %v251
      %v253 = vlaneseq
      %v254 = vshrl.u32 %v253, 7
      %v255 = vsub.s32 5, %v254
      %v256 = vrot.slane %v190, %v255
      %v257 = vlaneseq
      %v258 = vshrl.u32 %v257, 7
      %v259 = vsub.s32 6, %v258
      %v260 = vrot.slane %v190, %v259
      %v261 = vlaneseq
      %v262 = vshrl.u32 %v261, 7
      %v263 = vsub.s32 7, %v262
      %v264 = vrot.slane %v190, %v263
      %v265 = vlaneseq
      %v266 = vshrl.u32 %v265, 7
      %v267 = vsub.s32 0, %v266
      %v268 = vrot.slane %v193, %v267
      %v269 = vlaneseq
      %v270 = vshrl.u32 %v269, 7
      %v271 = vsub.s32 1, %v270
      %v272 = vrot.slane %v193, %v271
      %v273 = vlaneseq
      %v274 = vshrl.u32 %v273, 7
      %v275 = vsub.s32 2, %v274
      %v276 = vrot.slane %v193, %v275
      %v277 = vlaneseq
      %v278 = vshrl.u32 %v277, 7
      %v279 = vsub.s32 3, %v278
      %v280 = vrot.slane %v193, %v279
      %v281 = vlaneseq
      %v282 = vshrl.u32 %v281, 7
      %v283 = vsub.s32 4, %v282
      %v284 = vrot.slane %v193, %v283
      %v285 = vlaneseq
      %v286 = vshrl.u32 %v285, 7
      %v287 = vsub.s32 5, %v286
      %v288 = vrot.slane %v193, %v287
      %v289 = vlaneseq
      %v290 = vshrl.u32 %v289, 7
      %v291 = vsub.s32 6, %v290
      %v292 = vrot.slane %v193, %v291
      %v293 = vlaneseq
      %v294 = vshrl.u32 %v293, 7
      %v295 = vsub.s32 7, %v294
      %v296 = vrot.slane %v193, %v295
      %v297 = vlaneseq
      %v298 = vshrl.u32 %v297, 7
      %v299 = vsub.s32 0, %v298
      %v300 = vrot.slane %v196, %v299
      %v301 = vlaneseq
      %v302 = vshrl.u32 %v301, 7
      %v303 = vsub.s32 1, %v302
      %v304 = vrot.slane %v196, %v303
      %v305 = vlaneseq
      %v306 = vshrl.u32 %v305, 7
      %v307 = vsub.s32 2, %v306
      %v308 = vrot.slane %v196, %v307
      %v309 = vlaneseq
      %v310 = vshrl.u32 %v309, 7
      %v311 = vsub.s32 3, %v310
      %v312 = vrot.slane %v196, %v311
      %v313 = vlaneseq
      %v314 = vshrl.u32 %v313, 7
      %v315 = vsub.s32 4, %v314
      %v316 = vrot.slane %v196, %v315
      %v317 = vlaneseq
      %v318 = vshrl.u32 %v317, 7
      %v319 = vsub.s32 5, %v318
      %v320 = vrot.slane %v196, %v319
      %v321 = vlaneseq
      %v322 = vshrl.u32 %v321, 7
      %v323 = vsub.s32 6, %v322
      %v324 = vrot.slane %v196, %v323
      %v325 = vlaneseq
      %v326 = vshrl.u32 %v325, 7
      %v327 = vsub.s32 7, %v326
      %v328 = vrot.slane %v196, %v327
      %v329 = vcombine.low %v204, %v208
      %v330 = vcombine.low %v212, %v216
      %v331 = vcombine.low %v220, %v224
      %v332 = vcombine.low %v228, %v232
      %v334 = vunpack.c.l.s4 1966171168
      %v335 = vunpack.c.0.s8 %v334
      %v336 = vlaneseq
      %v337 = vshrl.u32 %v336, 7
      %v338 = vsub.s32 %v335, %v337
      %v339 = vrot.slane %v329, %v338
      %v341 = vunpack.c.l.s4 1966171168
      %v342 = vunpack.c.0.s8 %v341
      %v343 = vlaneseq
      %v344 = vshrl.u32 %v343, 7
      %v345 = vsub.s32 %v342, %v344
      %v346 = vrot.slane %v330, %v345
      %v348 = vunpack.c.l.s4 1966171168
      %v349 = vunpack.c.0.s8 %v348
      %v350 = vlaneseq
      %v351 = vshrl.u32 %v350, 7
      %v352 = vsub.s32 %v349, %v351
      %v353 = vrot.slane %v331, %v352
      %v355 = vunpack.c.l.s4 1966171168
      %v356 = vunpack.c.0.s8 %v355
      %v357 = vlaneseq
      %v358 = vshrl.u32 %v357, 7
      %v359 = vsub.s32 %v356, %v358
      %v360 = vrot.slane %v332, %v359
      %v361 = vcombine.low %v339, %v346
      %v362 = vcombine.low %v353, %v360
      %v364 = vunpack.c.l.s4 1966171168
      %v365 = vunpack.c.0.s8 %v364
      %v366 = vlaneseq
      %v367 = vshrl.u32 %v366, 7
      %v368 = vsub.s32 %v365, %v367
      %v369 = vrot.slane %v361, %v368
      %v371 = vunpack.c.l.s4 1966171168
      %v372 = vunpack.c.0.s8 %v371
      %v373 = vlaneseq
      %v374 = vshrl.u32 %v373, 7
      %v375 = vsub.s32 %v372, %v374
      %v376 = vrot.slane %v362, %v375
      %v377 = vcombine.low %v369, %v376
      %v378 = vcombine.low %v236, %v240
      %v379 = vcombine.low %v244, %v248
      %v380 = vcombine.low %v252, %v256
      %v381 = vcombine.low %v260, %v264
      %v383 = vunpack.c.l.s4 1966171168
      %v384 = vunpack.c.0.s8 %v383
      %v385 = vlaneseq
      %v386 = vshrl.u32 %v385, 7
      %v387 = vsub.s32 %v384, %v386
      %v388 = vrot.slane %v378, %v387
      %v390 = vunpack.c.l.s4 1966171168
      %v391 = vunpack.c.0.s8 %v390
      %v392 = vlaneseq
      %v393 = vshrl.u32 %v392, 7
      %v394 = vsub.s32 %v391, %v393
      %v395 = vrot.slane %v379, %v394
      %v397 = vunpack.c.l.s4 1966171168
      %v398 = vunpack.c.0.s8 %v397
      %v399 = vlaneseq
      %v400 = vshrl.u32 %v399, 7
      %v401 = vsub.s32 %v398, %v400
      %v402 = vrot.slane %v380, %v401
      %v404 = vunpack.c.l.s4 1966171168
      %v405 = vunpack.c.0.s8 %v404
      %v406 = vlaneseq
      %v407 = vshrl.u32 %v406, 7
      %v408 = vsub.s32 %v405, %v407
      %v409 = vrot.slane %v381, %v408
      %v410 = vcombine.low %v388, %v395
      %v411 = vcombine.low %v402, %v409
      %v413 = vunpack.c.l.s4 1966171168
      %v414 = vunpack.c.0.s8 %v413
      %v415 = vlaneseq
      %v416 = vshrl.u32 %v415, 7
      %v417 = vsub.s32 %v414, %v416
      %v418 = vrot.slane %v410, %v417
      %v420 = vunpack.c.l.s4 1966171168
      %v421 = vunpack.c.0.s8 %v420
      %v422 = vlaneseq
      %v423 = vshrl.u32 %v422, 7
      %v424 = vsub.s32 %v421, %v423
      %v425 = vrot.slane %v411, %v424
      %v426 = vcombine.low %v418, %v425
      %v427 = vcombine.low %v268, %v272
      %v428 = vcombine.low %v276, %v280
      %v429 = vcombine.low %v284, %v288
      %v430 = vcombine.low %v292, %v296
      %v432 = vunpack.c.l.s4 1966171168
      %v433 = vunpack.c.0.s8 %v432
      %v434 = vlaneseq
      %v435 = vshrl.u32 %v434, 7
      %v436 = vsub.s32 %v433, %v435
      %v437 = vrot.slane %v427, %v436
      %v439 = vunpack.c.l.s4 1966171168
      %v440 = vunpack.c.0.s8 %v439
      %v441 = vlaneseq
      %v442 = vshrl.u32 %v441, 7
      %v443 = vsub.s32 %v440, %v442
      %v444 = vrot.slane %v428, %v443
      %v446 = vunpack.c.l.s4 1966171168
      %v447 = vunpack.c.0.s8 %v446
      %v448 = vlaneseq
      %v449 = vshrl.u32 %v448, 7
      %v450 = vsub.s32 %v447, %v449
      %v451 = vrot.slane %v429, %v450
      %v453 = vunpack.c.l.s4 1966171168
      %v454 = vunpack.c.0.s8 %v453
      %v455 = vlaneseq
      %v456 = vshrl.u32 %v455, 7
      %v457 = vsub.s32 %v454, %v456
      %v458 = vrot.slane %v430, %v457
      %v459 = vcombine.low %v437, %v444
      %v460 = vcombine.low %v451, %v458
      %v462 = vunpack.c.l.s4 1966171168
      %v463 = vunpack.c.0.s8 %v462
      %v464 = vlaneseq
      %v465 = vshrl.u32 %v464, 7
      %v466 = vsub.s32 %v463, %v465
      %v467 = vrot.slane %v459, %v466
      %v469 = vunpack.c.l.s4 1966171168
      %v470 = vunpack.c.0.s8 %v469
      %v471 = vlaneseq
      %v472 = vshrl.u32 %v471, 7
      %v473 = vsub.s32 %v470, %v472
      %v474 = vrot.slane %v460, %v473
      %v475 = vcombine.low %v467, %v474
      %v476 = vcombine.low %v300, %v304
      %v477 = vcombine.low %v308, %v312
      %v478 = vcombine.low %v316, %v320
      %v479 = vcombine.low %v324, %v328
      %v481 = vunpack.c.l.s4 1966171168
      %v482 = vunpack.c.0.s8 %v481
      %v483 = vlaneseq
      %v484 = vshrl.u32 %v483, 7
      %v485 = vsub.s32 %v482, %v484
      %v486 = vrot.slane %v476, %v485
      %v488 = vunpack.c.l.s4 1966171168
      %v489 = vunpack.c.0.s8 %v488
      %v490 = vlaneseq
      %v491 = vshrl.u32 %v490, 7
      %v492 = vsub.s32 %v489, %v491
      %v493 = vrot.slane %v477, %v492
      %v495 = vunpack.c.l.s4 1966171168
      %v496 = vunpack.c.0.s8 %v495
      %v497 = vlaneseq
      %v498 = vshrl.u32 %v497, 7
      %v499 = vsub.s32 %v496, %v498
      %v500 = vrot.slane %v478, %v499
      %v502 = vunpack.c.l.s4 1966171168
      %v503 = vunpack.c.0.s8 %v502
      %v504 = vlaneseq
      %v505 = vshrl.u32 %v504, 7
      %v506 = vsub.s32 %v503, %v505
      %v507 = vrot.slane %v479, %v506
      %v508 = vcombine.low %v486, %v493
      %v509 = vcombine.low %v500, %v507
      %v511 = vunpack.c.l.s4 1966171168
      %v512 = vunpack.c.0.s8 %v511
      %v513 = vlaneseq
      %v514 = vshrl.u32 %v513, 7
      %v515 = vsub.s32 %v512, %v514
      %v516 = vrot.slane %v508, %v515
      %v518 = vunpack.c.l.s4 1966171168
      %v519 = vunpack.c.0.s8 %v518
      %v520 = vlaneseq
      %v521 = vshrl.u32 %v520, 7
      %v522 = vsub.s32 %v519, %v521
      %v523 = vrot.slane %v509, %v522
      %v524 = vcombine.low %v516, %v523
      %525 = vset.pattern.permute.xlu0 0
      %526 = vperm.xlu0 %525, %v377
      %v527 = vpop.permute.xlu0 %526
      %528 = vset.pattern.permute.xlu0 0
      %529 = vperm.xlu0 %528, %v426
      %v530 = vpop.permute.xlu0 %529
      %531 = vset.pattern.permute.xlu0 0
      %532 = vperm.xlu0 %531, %v475
      %v533 = vpop.permute.xlu0 %532
      %534 = vset.pattern.permute.xlu0 0
      %535 = vperm.xlu0 %534, %v524
      %v536 = vpop.permute.xlu0 %535
      %v537 = vlaneseq
      %v538 = vand.u32 %v537, 127
      %v539 = vlaneseq
      %v540 = vshrl.u32 %v539, 7
      %v541 = vsub.s32 %v538, %v540
      %v542 = vrot.slane %v527, %v541
      %v543 = vadd.s32 %v538, 4294967288
      %v544 = vlaneseq
      %v545 = vshrl.u32 %v544, 7
      %v546 = vsub.s32 %v543, %v545
      %v547 = vrot.slane %v530, %v546
      %vm548 = vcmask 130112
      %v549 = vsel %vm548, %v547, %v542
      %v550 = vadd.s32 %v538, 4294967280
      %v551 = vlaneseq
      %v552 = vshrl.u32 %v551, 7
      %v553 = vsub.s32 %v550, %v552
      %v554 = vrot.slane %v533, %v553
      %vm555 = vcmask 195712
      %v556 = vsel %vm555, %v554, %v549
      %v557 = vadd.s32 %v538, 4294967272
      %v558 = vlaneseq
      %v559 = vshrl.u32 %v558, 7
      %v560 = vsub.s32 %v557, %v559
      %v561 = vrot.slane %v536, %v560
      %vm562 = vcmask 261312
      %v563 = vsel %vm562, %v561, %v556
      %v565 = vunpack.c.l.s4 1966171168
      %v566 = vunpack.c.0.s8 %v565
      %v567 = vlaneseq
      %v568 = vshrl.u32 %v567, 7
      %v569 = vsub.s32 %v566, %v568
      %v570 = vrot.slane %v563, %v569
      %v572 = vunpack.c.l.s4 1966171168
      %v573 = vunpack.c.0.s8 %v572
      %v574 = vlaneseq
      %v575 = vshrl.u32 %v574, 7
      %v576 = vsub.s32 %v573, %v575
      %v577 = vrot.slane %v570, %v576
      %v579 = vadd.f32 %v184, %v577
      %vm580 = vcmask 253952
      %581 = vst.msk [vmem:[#allocation2] sm:$0x1] %vm580, %v579
      // Predicated region
      $region29: #{channel_attention.1} parent=23 // pred_check
        %p582 = pneg %p170
      $region30: #{channel_attention.1} parent=23 // pred_check_branch
        %584 = sbr.rel (%p582) target = $region32
      $region31: #{channel_attention.1} parent=23 // pred_region
        %v585 = vld [vmem:[#allocation2] sm:$0x1]
        %v586 = vmul.f32 %v585, 0.00390625
        %587 = vst.msk [vmem:[%s169] sm:$0x1] %vm580, %v586
      $region32: #{channel_attention.1} parent=23 // pred_fallthru
        _
      %p588 = scmp.lt.s32.totalorder %s17, 1
      %s589 = scalar_select %p588, %s17, 1
      %p590 = scmp.lt.s32.totalorder %s18, 0
      %s591 = scalar_select %p590, %s18, 0
      %s592 = sadd.s32 %s591, %s589
      %s593 = scalar_lea.vmem %s1, %s592
      // Predicated region
      $region33: #{channel_attention.1} parent=23 // pred_check
        %p594 = pneg %p81
      $region34: #{channel_attention.1} parent=23 // pred_check_branch
        %596 = sbr.rel (%p594) target = $region36
      $region35: #{channel_attention.1} parent=23 // pred_region
        _
      $region36: #{channel_attention.1} parent=23 // pred_fallthru
        _
    $region24: #{channel_attention.1} parent=5 // pred_fallthru
      _
    %p597 = scmp.le.s32.totalorder 2, %s7
    // Predicated region
    $region37: #{channel_attention.1} parent=5 // pred_check
      %p598 = pneg %p597
    $region38: #{channel_attention.1} parent=5 // pred_check_branch
      %600 = sbr.rel (%p598) target = $region40
    $region39: #{channel_attention.1} parent=5 // pred_region
      %s601 = ssub.s32 %s7, 2
      // Predicated region
      $region41: #{channel_attention.1} parent=39 // pred_check
        %p602 = pneg %p87
      $region42: #{channel_attention.1} parent=39 // pred_check_branch
        %604 = sbr.rel (%p602) target = $region44
      $region43: #{channel_attention.1} parent=39 // pred_region
        %p605 = scmp.lt.s32.totalorder %s20, 1
        %s606 = scalar_select %p605, %s20, 1
        %p607 = scmp.lt.s32.totalorder %s21, 0
        %s608 = scalar_select %p607, %s21, 0
        %s609 = sadd.s32 %s608, %s606
        %s610 = scalar_lea.vmem %s1, %s609
      $region44: #{channel_attention.1} parent=39 // pred_fallthru
        _
    $region40: #{channel_attention.1} parent=5 // pred_fallthru
      _
  $region6: #{channel_attention.1} parent=0 // loop_footer
    %s11 = sadd.s32 1, %s7
  $region7: #{channel_attention.1} parent=0 // loop_footer_branch
    %6 = sbr.rel target = $region3
  $region8: #{channel_attention.1} parent=0 // loop_exit
    _

</llo_original>
